<compile_context>
chip_gen: v7x
topology: tpu7x:2x2x1
jax: 0.10.0
libtpu: 0.0.40
codegen_flags: <defaults>
</compile_context>

<pallas_src>
import functools

import jax
import jax.numpy as jnp
from jax.experimental import pallas as pl
from jax.experimental.pallas import tpu as pltpu


def _round_up(a, b):
    return ((a + b - 1) // b) * b


def _outerprod_linear_kernel(xt_ref, w_ref, o_ref, feats_ref, *, emb_dim):
    """xt_ref: (D, tile)   transposed node features
       w_ref : (out_dim, D + D*D)   lifted weight (zeros on diag/lower tri)
       o_ref : (out_dim, tile)      transposed output
       feats_ref: VMEM scratch (D + D*D, tile)"""
    D = emb_dim
    xt = xt_ref[...].astype(jnp.float32)                     # (D, tile)

    # Row block 0: the raw features themselves.
    feats_ref[0:D, :] = xt
    # Row blocks 1..D: full outer product, grouped by first index i so every
    # scratch store is an aligned, full (D, tile) sublane block (D=8 here).
    # NOTE: for emb_dim >> 8, switch to packed triu rows + lax.fori_loop to
    # avoid the ~2x K tax and unrolled-code growth.
    for i in range(D):                                        # static, small D
        feats_ref[D + i * D:D + (i + 1) * D, :] = xt[i:i + 1, :] * xt

    # Single MXU matmul: (out_dim, D+D*D) @ (D+D*D, tile) -> (out_dim, tile).
    o_ref[...] = jnp.dot(
        w_ref[...].astype(jnp.float32), feats_ref[...],
        preferred_element_type=jnp.float32).astype(o_ref.dtype)


def prepare_weight(weight, emb_dim):
    """Lift the nn.Linear weight (out_dim, D + D(D-1)/2) to (out_dim, D + D*D)
    with the pair weights scattered to their (i, j) outer-product positions
    (strict upper triangle, row-major == torch.triu_indices order).
    Call this ONCE per weight update (hoisted out of the forward hot path)."""
    D = emb_dim
    out_dim, F = weight.shape
    assert F == D + D * (D - 1) // 2, "weight does not match emb_dim"
    w_x = weight[:, :D]                                       # (out_dim, D)
    w_c = weight[:, D:]                                       # (out_dim, P)
    iu, ju = jnp.triu_indices(D, k=1)                         # row-major triu
    w_pair = jnp.zeros((out_dim, D * D), weight.dtype).at[:, iu * D + ju].set(w_c)
    return jnp.concatenate([w_x, w_pair], axis=1)             # (out_dim, D+D*D)


def outerprod_and_linear_prepared(node_x, w_full, *, tile_n=1024):
    """Fast path: takes the pre-lifted weight from prepare_weight."""
    N, D = node_x.shape
    out_dim, K = w_full.shape
    assert K == D + D * D

    # Tile choice: multiple of 128, as large as useful.  Clamp to the padded
    # problem size so small graphs don't over-pad; big graphs get many grid
    # steps (good for v7x's 2-TC megacore via the "parallel" axis).
    tile_n = _round_up(max(tile_n, 128), 128)
    tile = min(tile_n, _round_up(N, 128))
    n_pad = _round_up(N, tile)

    # Layout plumbing (cheap XLA ops): pad rows, transpose to (D, N_pad) so the
    # kernel sees nodes on the lane axis.
    xt = jnp.transpose(jnp.pad(node_x, ((0, n_pad - N), (0, 0))))   # (D, N_pad)

    grid = (n_pad // tile,)
    out_t = pl.pallas_call(
        functools.partial(_outerprod_linear_kernel, emb_dim=D),
        out_shape=jax.ShapeDtypeStruct((out_dim, n_pad), node_x.dtype),
        grid_spec=pltpu.PrefetchScalarGridSpec(
            num_scalar_prefetch=0,
            grid=grid,
            in_specs=[
                pl.BlockSpec((D, tile), lambda i: (0, i)),          # x^T tile
                pl.BlockSpec((out_dim, K), lambda i: (0, 0)),       # weight (resident)
            ],
            out_specs=pl.BlockSpec((out_dim, tile), lambda i: (0, i)),
            scratch_shapes=[pltpu.VMEM((K, tile), jnp.float32)],    # feats scratch
        ),
        compiler_params=pltpu.CompilerParams(
            dimension_semantics=("parallel",)),
    )(xt, w_full)

    return jnp.transpose(out_t)[:N]                           # (N, out_dim)


def outerprod_and_linear(node_x, weight, *, tile_n=1024):
    """Convenience wrapper taking the PyTorch nn.Linear weight layout
    (out_dim, emb_dim + emb_dim*(emb_dim-1)//2).  In training code, call
    prepare_weight once and use outerprod_and_linear_prepared directly."""
    D = node_x.shape[1]
    w_full = prepare_weight(weight, D)
    return outerprod_and_linear_prepared(node_x, w_full, tile_n=tile_n)


def _reference(node_x, weight):
    """Pure-JAX reference matching the PyTorch forward."""
    N, D = node_x.shape
    B = node_x[:, :, None] * node_x[:, None, :]               # (N, D, D)
    iu, ju = jnp.triu_indices(D, k=1)
    C = B[:, iu, ju]                                          # (N, D*(D-1)/2)
    feats = jnp.concatenate([node_x, C], axis=1)
    return feats @ weight.T


if __name__ == "__main__":
    emb_dim, out_dim = 8, 32
    F = emb_dim + (emb_dim * emb_dim - emb_dim) // 2

    key = jax.random.PRNGKey(0)
    k_x, k_w, k_x2 = jax.random.split(key, 3)

    # Xavier-uniform init for nn.Linear(F, out_dim, bias=False): weight (out_dim, F)
    limit = (6.0 / (F + out_dim)) ** 0.5
    weight = jax.random.uniform(k_w, (out_dim, F), dtype=jnp.float32,
                                minval=-limit, maxval=limit)

    # Small graph (single grid step).
    N = 16
    node_x = jax.random.normal(k_x, (N, emb_dim), dtype=jnp.float32)
    out = jax.block_until_ready(outerprod_and_linear(node_x, weight))
    ref = _reference(node_x, weight)
    assert out.shape == (N, out_dim)
    assert jnp.allclose(out, ref, atol=1e-4, rtol=1e-4), "mismatch vs reference (N=16)"

    # Larger graph exercising a multi-step grid + row padding.
    N2 = 300
    node_x2 = jax.random.normal(k_x2, (N2, emb_dim), dtype=jnp.float32)
    out2 = jax.block_until_ready(
        outerprod_and_linear(node_x2, weight, tile_n=128))
    ref2 = _reference(node_x2, weight)
    assert out2.shape == (N2, out_dim)
    assert jnp.allclose(out2, ref2, atol=1e-4, rtol=1e-4), "mismatch vs reference (N=300)"

    print("KERNEL_OK")
</pallas_src>

<mosaic_0001>
module attributes {stable_mosaic.version = 11 : i64} {
  func.func @_outerprod_linear_kernel(%arg0: i32, %arg1: memref<8x128xf32, #tpu.memory_space<vmem>>, %arg2: memref<32x72xf32, #tpu.memory_space<vmem>>, %arg3: memref<32x128xf32, #tpu.memory_space<vmem>>, %arg4: memref<72x128xf32, #tpu.memory_space<vmem>>) attributes {dimension_semantics = [#tpu.dimension_semantics<parallel>], iteration_bounds = array<i64: 1>, scalar_prefetch = 0 : i64, scratch_operands = 1 : i64, tpu.core_type = #tpu.core_type<tc>, window_params = [{transform_indices = @transform_0, window_bounds = array<i64: 8, 128>}, {pipeline_mode = #tpu.pipeline_mode<synchronous>, transform_indices = @transform_1, window_bounds = array<i64: 32, 72>}, {transform_indices = @transform_2, window_bounds = array<i64: 32, 128>}]} {
    %c0 = arith.constant 0 : index
    %c0_0 = arith.constant 0 : index
    %0 = vector.load %arg1[%c0, %c0_0] : memref<8x128xf32, #tpu.memory_space<vmem>>, vector<8x128xf32>
    %c0_1 = arith.constant 0 : index
    %c0_2 = arith.constant 0 : index
    %1 = vector.load %arg4[%c0_1, %c0_2] : memref<72x128xf32, #tpu.memory_space<vmem>>, vector<8x128xf32>
    tpu.vector_store %arg4[%c0_1, %c0_2], %0 {strides = array<i32>} : memref<72x128xf32, #tpu.memory_space<vmem>>, vector<8x128xf32>,
    %2 = vector.extract_strided_slice %0 {offsets = [0, 0], sizes = [1, 128], strides = [1, 1]} : vector<8x128xf32> to vector<1x128xf32>
    %3 = vector.broadcast %2 : vector<1x128xf32> to vector<8x128xf32>
    %4 = arith.mulf %3, %0 : vector<8x128xf32>
    %c8 = arith.constant 8 : index
    %c0_3 = arith.constant 0 : index
    %5 = vector.load %arg4[%c8, %c0_3] : memref<72x128xf32, #tpu.memory_space<vmem>>, vector<8x128xf32>
    tpu.vector_store %arg4[%c8, %c0_3], %4 {strides = array<i32>} : memref<72x128xf32, #tpu.memory_space<vmem>>, vector<8x128xf32>,
    %6 = vector.extract_strided_slice %0 {offsets = [1, 0], sizes = [1, 128], strides = [1, 1]} : vector<8x128xf32> to vector<1x128xf32>
    %7 = vector.broadcast %6 : vector<1x128xf32> to vector<8x128xf32>
    %8 = arith.mulf %7, %0 : vector<8x128xf32>
    %c16 = arith.constant 16 : index
    %c0_4 = arith.constant 0 : index
    %9 = vector.load %arg4[%c16, %c0_4] : memref<72x128xf32, #tpu.memory_space<vmem>>, vector<8x128xf32>
    tpu.vector_store %arg4[%c16, %c0_4], %8 {strides = array<i32>} : memref<72x128xf32, #tpu.memory_space<vmem>>, vector<8x128xf32>,
    %10 = vector.extract_strided_slice %0 {offsets = [2, 0], sizes = [1, 128], strides = [1, 1]} : vector<8x128xf32> to vector<1x128xf32>
    %11 = vector.broadcast %10 : vector<1x128xf32> to vector<8x128xf32>
    %12 = arith.mulf %11, %0 : vector<8x128xf32>
    %c24 = arith.constant 24 : index
    %c0_5 = arith.constant 0 : index
    %13 = vector.load %arg4[%c24, %c0_5] : memref<72x128xf32, #tpu.memory_space<vmem>>, vector<8x128xf32>
    tpu.vector_store %arg4[%c24, %c0_5], %12 {strides = array<i32>} : memref<72x128xf32, #tpu.memory_space<vmem>>, vector<8x128xf32>,
    %14 = vector.extract_strided_slice %0 {offsets = [3, 0], sizes = [1, 128], strides = [1, 1]} : vector<8x128xf32> to vector<1x128xf32>
    %15 = vector.broadcast %14 : vector<1x128xf32> to vector<8x128xf32>
    %16 = arith.mulf %15, %0 : vector<8x128xf32>
    %c32 = arith.constant 32 : index
    %c0_6 = arith.constant 0 : index
    %17 = vector.load %arg4[%c32, %c0_6] : memref<72x128xf32, #tpu.memory_space<vmem>>, vector<8x128xf32>
    tpu.vector_store %arg4[%c32, %c0_6], %16 {strides = array<i32>} : memref<72x128xf32, #tpu.memory_space<vmem>>, vector<8x128xf32>,
    %18 = vector.extract_strided_slice %0 {offsets = [4, 0], sizes = [1, 128], strides = [1, 1]} : vector<8x128xf32> to vector<1x128xf32>
    %19 = vector.broadcast %18 : vector<1x128xf32> to vector<8x128xf32>
    %20 = arith.mulf %19, %0 : vector<8x128xf32>
    %c40 = arith.constant 40 : index
    %c0_7 = arith.constant 0 : index
    %21 = vector.load %arg4[%c40, %c0_7] : memref<72x128xf32, #tpu.memory_space<vmem>>, vector<8x128xf32>
    tpu.vector_store %arg4[%c40, %c0_7], %20 {strides = array<i32>} : memref<72x128xf32, #tpu.memory_space<vmem>>, vector<8x128xf32>,
    %22 = vector.extract_strided_slice %0 {offsets = [5, 0], sizes = [1, 128], strides = [1, 1]} : vector<8x128xf32> to vector<1x128xf32>
    %23 = vector.broadcast %22 : vector<1x128xf32> to vector<8x128xf32>
    %24 = arith.mulf %23, %0 : vector<8x128xf32>
    %c48 = arith.constant 48 : index
    %c0_8 = arith.constant 0 : index
    %25 = vector.load %arg4[%c48, %c0_8] : memref<72x128xf32, #tpu.memory_space<vmem>>, vector<8x128xf32>
    tpu.vector_store %arg4[%c48, %c0_8], %24 {strides = array<i32>} : memref<72x128xf32, #tpu.memory_space<vmem>>, vector<8x128xf32>,
    %26 = vector.extract_strided_slice %0 {offsets = [6, 0], sizes = [1, 128], strides = [1, 1]} : vector<8x128xf32> to vector<1x128xf32>
    %27 = vector.broadcast %26 : vector<1x128xf32> to vector<8x128xf32>
    %28 = arith.mulf %27, %0 : vector<8x128xf32>
    %c56 = arith.constant 56 : index
    %c0_9 = arith.constant 0 : index
    %29 = vector.load %arg4[%c56, %c0_9] : memref<72x128xf32, #tpu.memory_space<vmem>>, vector<8x128xf32>
    tpu.vector_store %arg4[%c56, %c0_9], %28 {strides = array<i32>} : memref<72x128xf32, #tpu.memory_space<vmem>>, vector<8x128xf32>,
    %30 = vector.extract_strided_slice %0 {offsets = [7, 0], sizes = [1, 128], strides = [1, 1]} : vector<8x128xf32> to vector<1x128xf32>
    %31 = vector.broadcast %30 : vector<1x128xf32> to vector<8x128xf32>
    %32 = arith.mulf %31, %0 : vector<8x128xf32>
    %c64 = arith.constant 64 : index
    %c0_10 = arith.constant 0 : index
    %33 = vector.load %arg4[%c64, %c0_10] : memref<72x128xf32, #tpu.memory_space<vmem>>, vector<8x128xf32>
    tpu.vector_store %arg4[%c64, %c0_10], %32 {strides = array<i32>} : memref<72x128xf32, #tpu.memory_space<vmem>>, vector<8x128xf32>,
    %c0_11 = arith.constant 0 : index
    %c0_12 = arith.constant 0 : index
    %34 = vector.load %arg2[%c0_11, %c0_12] : memref<32x72xf32, #tpu.memory_space<vmem>>, vector<32x72xf32>
    %c0_13 = arith.constant 0 : index
    %c0_14 = arith.constant 0 : index
    %35 = vector.load %arg4[%c0_13, %c0_14] : memref<72x128xf32, #tpu.memory_space<vmem>>, vector<72x128xf32>
    %cst = arith.constant dense<0.000000e+00> : vector<32x128xf32>
    %36 = tpu.matmul %34, %35, %cst {dimension_numbers = #tpu.dot_dimension_numbers<[1], [0], [0], [1], [0, 0, 1, 1], [], []>} : vector<32x72xf32>, vector<72x128xf32>, vector<32x128xf32> -> vector<32x128xf32>
    %c0_15 = arith.constant 0 : index
    %c0_16 = arith.constant 0 : index
    %37 = vector.load %arg3[%c0_15, %c0_16] : memref<32x128xf32, #tpu.memory_space<vmem>>, vector<32x128xf32>
    tpu.vector_store %arg3[%c0_15, %c0_16], %36 {strides = array<i32>} : memref<32x128xf32, #tpu.memory_space<vmem>>, vector<32x128xf32>,
    return
  }
  func.func @transform_0(%arg0: i32) -> (i32, i32) {
    %c0_i32 = arith.constant 0 : i32
    %c0_i32_0 = arith.constant 0 : i32
    return %c0_i32, %arg0 : i32, i32
  }
  func.func @transform_1(%arg0: i32) -> (i32, i32) {
    %c0_i32 = arith.constant 0 : i32
    %c0_i32_0 = arith.constant 0 : i32
    %c0_i32_1 = arith.constant 0 : i32
    return %c0_i32, %c0_i32_0 : i32, i32
  }
  func.func @transform_2(%arg0: i32) -> (i32, i32) {
    %c0_i32 = arith.constant 0 : i32
    %c0_i32_0 = arith.constant 0 : i32
    return %c0_i32, %arg0 : i32, i32
  }
}

</mosaic_0001>

<llo_original>
// kernel: tpu_custom_call.1
$region0: #{tpu_custom_call.1}
  #allocation0 [shape = 'u32[]', space=smem, size = 0x4, offset = 0x4, fixed_abs, tag = 'smem constant byte address 0x4 - core index']
  #allocation1 [shape = 'u32[144,128]{1,0:T(1,128)}', space=vmem, size = 0x12000, scoped, tag = 'internal scratch']
  #allocation2 [shape = 'f32[72,128]{1,0:T(8,128)}', space=vmem, size = 0x9000, scoped, tag = 'scratch operand']
  %s0 = inlined_call_operand.hbm [shape: f32[8,128], index: 0, kind: input, shape index: {}]
  %s1 = inlined_call_operand.hbm [shape: f32[32,72], index: 1, kind: input, shape index: {}]
  %s2 = inlined_call_operand.hbm [shape: f32[32,128], index: 2, kind: output, shape index: {}]
  %s3 = sld [smem:[#allocation0]]
  $region26: #{tpu_custom_call.1} parent=0
    _
  %s5 = ssub.s32 1, %s3
  %s6 = scalar_select 0, %s5, %s3
  $region1: #{tpu_custom_call.1} parent=0
    #allocation3 [shape = 'u8[4096]{0}', space=vmem, size = 0x1000, scoped, tag = 'input window, operand 0, single buffered']
    #allocation4 [shape = 's32[1]{0}', space=sflag, size = 0x4, scoped, tag = 'scoped memory for tpu_custom_call.1']
    #allocation5 [shape = 's32[1]{0}', space=sflag, size = 0x4, scoped, tag = 'scoped memory for tpu_custom_call.1']
    #allocation6 [shape = 'u8[16384]{0}', space=vmem, size = 0x4000, scoped, tag = 'input window, operand 1, single buffered']
    #allocation7 [shape = 's32[1]{0}', space=sflag, size = 0x4, scoped, tag = 'scoped memory for tpu_custom_call.1']
    #allocation8 [shape = 'u8[16384]{0}', space=vmem, size = 0x4000, scoped, tag = 'output window, operand 0, single buffered']
    %7 = vsyncpa [#allocation4], 0
    %8 = vsyncpa [#allocation7], 0
    %9 = vsyncpa [#allocation5], 0
    // Predicated region
    $region2: #{tpu_custom_call.1} parent=1 // pred_check
      _
    $region3: #{tpu_custom_call.1} parent=1 // pred_check_branch
      %11 = sbr.rel (0) target = $region5
    $region4: #{tpu_custom_call.1} parent=1 // pred_region
      %s13 = ssub.s32 128, 128
      %14 = vsyncadd [#allocation4], %s13
      %s16 = sshll.u32 [#allocation3], 4
      %s17 = int_to_ptr.vmem [resolvable:$true] %s16
      %19 = dma.hbm_to_vmem [thread:$0]  %s0, 128, %s17, [#allocation4]
    $region5: #{tpu_custom_call.1} parent=1 // pred_fallthru
      _
    // Predicated region
    $region6: #{tpu_custom_call.1} parent=1 // pred_check
      _
    $region7: #{tpu_custom_call.1} parent=1 // pred_check_branch
      %21 = sbr.rel (0) target = $region9
    $region8: #{tpu_custom_call.1} parent=1 // pred_region
      %s23 = ssub.s32 512, 512
      %24 = vsyncadd [#allocation7], %s23
      %s25 = sshll.u32 [#allocation6], 4
      %s26 = int_to_ptr.vmem [resolvable:$true] %s25
      %31 = dma.hbm_to_vmem [thread:$0]  %s1, 512, %s26, [#allocation7], 128, 128, 8
    $region9: #{tpu_custom_call.1} parent=1 // pred_fallthru
      _
    // Predicated region
    $region10: #{tpu_custom_call.1} parent=1 // pred_check
      _
    $region11: #{tpu_custom_call.1} parent=1 // pred_check_branch
      %33 = sbr.rel (0) target = $region13
    $region12: #{tpu_custom_call.1} parent=1 // pred_region
      %34 = dma.done [#allocation4], 128
    $region13: #{tpu_custom_call.1} parent=1 // pred_fallthru
      _
    // Predicated region
    $region14: #{tpu_custom_call.1} parent=1 // pred_check
      _
    $region15: #{tpu_custom_call.1} parent=1 // pred_check_branch
      %36 = sbr.rel (0) target = $region17
    $region16: #{tpu_custom_call.1} parent=1 // pred_region
      %37 = dma.done [#allocation7], 512
    $region17: #{tpu_custom_call.1} parent=1 // pred_fallthru
      _
    %v38 = vld [vmem:[#allocation3] sm:$0xff]
    %39 = vst [vmem:[#allocation2] sm:$0xff] %v38
    %v40 = vlaneseq
    %v41 = vshrl.u32 %v40, 7
    %v42 = vsub.s32 0, %v41
    %v43 = vrot.slane %v38, %v42
    %v44 = vmul.f32 %v43, %v38
    %45 = vst [vmem:[#allocation2 + $0x8] sm:$0xff] %v44
    %v46 = vlaneseq
    %v47 = vshrl.u32 %v46, 7
    %v48 = vsub.s32 1, %v47
    %v49 = vrot.slane %v38, %v48
    %v50 = vmul.f32 %v49, %v38
    %51 = vst [vmem:[#allocation2 + $0x10] sm:$0xff] %v50
    %v52 = vlaneseq
    %v53 = vshrl.u32 %v52, 7
    %v54 = vsub.s32 2, %v53
    %v55 = vrot.slane %v38, %v54
    %v56 = vmul.f32 %v55, %v38
    %57 = vst [vmem:[#allocation2 + $0x18] sm:$0xff] %v56
    %v58 = vlaneseq
    %v59 = vshrl.u32 %v58, 7
    %v60 = vsub.s32 3, %v59
    %v61 = vrot.slane %v38, %v60
    %v62 = vmul.f32 %v61, %v38
    %63 = vst [vmem:[#allocation2 + $0x20] sm:$0xff] %v62
    %v64 = vlaneseq
    %v65 = vshrl.u32 %v64, 7
    %v66 = vsub.s32 4, %v65
    %v67 = vrot.slane %v38, %v66
    %v68 = vmul.f32 %v67, %v38
    %69 = vst [vmem:[#allocation2 + $0x28] sm:$0xff] %v68
    %v70 = vlaneseq
    %v71 = vshrl.u32 %v70, 7
    %v72 = vsub.s32 5, %v71
    %v73 = vrot.slane %v38, %v72
    %v74 = vmul.f32 %v73, %v38
    %75 = vst [vmem:[#allocation2 + $0x30] sm:$0xff] %v74
    %v76 = vlaneseq
    %v77 = vshrl.u32 %v76, 7
    %v78 = vsub.s32 6, %v77
    %v79 = vrot.slane %v38, %v78
    %v80 = vmul.f32 %v79, %v38
    %81 = vst [vmem:[#allocation2 + $0x38] sm:$0xff] %v80
    %v82 = vlaneseq
    %v83 = vshrl.u32 %v82, 7
    %v84 = vsub.s32 7, %v83
    %v85 = vrot.slane %v38, %v84
    %v86 = vmul.f32 %v85, %v38
    %87 = vst [vmem:[#allocation2 + $0x40] sm:$0xff] %v86
    %v88 = vld [vmem:[#allocation6] sm:$0xff]
    %v89 = vld [vmem:[#allocation6 + $0x8] sm:$0xff]
    %v90 = vld [vmem:[#allocation6 + $0x10] sm:$0xff]
    %v91 = vld [vmem:[#allocation6 + $0x18] sm:$0xff]
    %v92 = vld [vmem:[#allocation2] sm:$0xff]
    %v93 = vld [vmem:[#allocation2 + $0x8] sm:$0xff]
    %v94 = vld [vmem:[#allocation2 + $0x10] sm:$0xff]
    %v95 = vld [vmem:[#allocation2 + $0x18] sm:$0xff]
    %v96 = vld [vmem:[#allocation2 + $0x20] sm:$0xff]
    %v97 = vld [vmem:[#allocation2 + $0x28] sm:$0xff]
    %v98 = vld [vmem:[#allocation2 + $0x30] sm:$0xff]
    %v99 = vld [vmem:[#allocation2 + $0x38] sm:$0xff]
    %v100 = vld [vmem:[#allocation2 + $0x40] sm:$0xff]
    %vm101 = vcmask 588800
    %v103 = vsel %vm101, %v88, 0
    %v106 = vsel %vm101, %v89, 0
    %v109 = vsel %vm101, %v90, 0
    %v112 = vsel %vm101, %v91, 0
    %114 = vmatprep.subr.mxu0 0.0
    %115 = vmatpush1.msra.mxu0 %v92
    %116 = vmatprep.subr.mxu0 0.0
    %117 = vmatpush1.msra.mxu0 %v93
    %118 = vmatprep.subr.mxu0 0.0
    %119 = vmatpush1.msra.mxu0 %v94
    %120 = vmatprep.subr.mxu0 0.0
    %121 = vmatpush1.msra.mxu0 %v95
    %122 = vmatprep.subr.mxu0 0.0
    %123 = vmatpush1.msra.mxu0 %v96
    %124 = vmatprep.subr.mxu0 0.0
    %125 = vmatpush1.msra.mxu0 %v97
    %126 = vmatprep.subr.mxu0 0.0
    %127 = vmatpush1.msra.mxu0 %v98
    %128 = vmatprep.subr.mxu0 0.0
    %129 = vmatpush1.msra.mxu0 %v99
    %130 = vmatprep.subr.mxu0 0.0
    %131 = vmatpush1.msra.mxu0 %v100
    %132 = vmatprep.subr.mxu0 0.0
    %133 = vmatpush1.msra.mxu0 0.0
    %134 = vmatprep.subr.mxu0 0.0
    %135 = vmatpush1.msra.mxu0 0.0
    %136 = vmatprep.subr.mxu0 0.0
    %137 = vmatpush1.msra.mxu0 0.0
    %138 = vmatprep.subr.mxu0 0.0
    %139 = vmatpush1.msra.mxu0 0.0
    %140 = vmatprep.subr.mxu0 0.0
    %141 = vmatpush1.msra.mxu0 0.0
    %142 = vmatprep.subr.mxu0 0.0
    %143 = vmatpush1.msra.mxu0 0.0
    %144 = vmatprep.subr.mxu0 0.0
    %145 = vmatpush1.msra.mxu0 0.0
    %146 = vmatprep.subr.mxu0 0.0
    %147 = vmatpush1.msra.mxu0 0.0
    %148 = vmatprep.subr.mxu0 0.0
    %149 = vmatpush1.msra.mxu0 0.0
    %150 = vmatprep.subr.mxu0 0.0
    %151 = vmatpush1.msra.mxu0 0.0
    %152 = vmatprep.subr.mxu0 0.0
    %153 = vmatpush1.msra.mxu0 0.0
    %154 = vmatprep.subr.mxu0 0.0
    %155 = vmatpush1.msra.mxu0 0.0
    %156 = vmatprep.subr.mxu0 0.0
    %157 = vmatpush1.msra.mxu0 0.0
    %158 = vmatprep.subr.mxu0 0.0
    %159 = vmatpush1.msra.mxu0 0.0
    %160 = vmatprep.subr.mxu0 0.0
    %161 = vmatpush1.msra.mxu0 0.0
    %162 = vmatprep.subr.mxu0 0.0
    %163 = vmatpush1.msra.mxu0 0.0
    %164 = vmatprep.subr.mxu0 0.0
    %165 = vmatpush1.msra.mxu0 0.0
    %166 = vmatprep.subr.mxu0 0.0
    %167 = vmatpush1.msra.mxu0 0.0
    %168 = vmatprep.subr.mxu0 0.0
    %169 = vmatpush1.msra.mxu0 0.0
    %170 = vmatprep.subr.mxu0 0.0
    %171 = vmatpush1.msra.mxu0 0.0
    %172 = vmatprep.subr.mxu0 0.0
    %173 = vmatpush1.msra.mxu0 0.0
    %174 = vmatprep.subr.mxu0 0.0
    %175 = vmatpush1.msra.mxu0 0.0
    %176 = vmatprep.subr.mxu0 0.0
    %177 = vmatpush1.msra.mxu0 0.0
    %178 = vmatprep.mubr.f32.mxu0 0.0
    %179 = vmatmul.mubr.f32.gmra.mrb[0].mxu0 %v103
    %v180 = vpop.f32.mrb[0].mxu0
    %v181 = vadd.f32 0.0, %v180
    %v182 = vpop.f32.mrb[0].mxu0
    %183 = vmatprep.mubr.f32.mxu0 0.0
    %184 = vmatmul.mubr.f32.gmra.mrb[0].mxu0 %v106
    %v185 = vpop.f32.mrb[0].mxu0
    %v186 = vadd.f32 0.0, %v185
    %v187 = vpop.f32.mrb[0].mxu0
    %188 = vmatprep.mubr.f32.mxu0 0.0
    %189 = vmatmul.mubr.f32.gmra.mrb[0].mxu0 %v109
    %v190 = vpop.f32.mrb[0].mxu0
    %v191 = vadd.f32 0.0, %v190
    %v192 = vpop.f32.mrb[0].mxu0
    %193 = vmatprep.mubr.f32.mxu0 0.0
    %194 = vmatmul.mubr.f32.gmra.mrb[0].mxu0 %v112
    %v195 = vpop.f32.mrb[0].mxu0
    %v196 = vadd.f32 0.0, %v195
    %v197 = vpop.f32.mrb[0].mxu0
    %198 = vdwg.mxu0
    %199 = vst [vmem:[#allocation8] sm:$0xff] %v181
    %200 = vst [vmem:[#allocation8 + $0x8] sm:$0xff] %v186
    %201 = vst [vmem:[#allocation8 + $0x10] sm:$0xff] %v191
    %202 = vst [vmem:[#allocation8 + $0x18] sm:$0xff] %v196
    // Predicated region
    $region18: #{tpu_custom_call.1} parent=1 // pred_check
      _
    $region19: #{tpu_custom_call.1} parent=1 // pred_check_branch
      %204 = sbr.rel (0) target = $region21
    $region20: #{tpu_custom_call.1} parent=1 // pred_region
      %s206 = ssub.s32 512, 512
      %207 = vsyncadd [#allocation5], %s206
      %s208 = sshll.u32 [#allocation8], 4
      %s209 = int_to_ptr.vmem [resolvable:$true] %s208
      %214 = dma.vmem_to_hbm [thread:$0]  %s209, 512, %s2, [#allocation5], 128, 128, 8
    $region21: #{tpu_custom_call.1} parent=1 // pred_fallthru
      _
    // Predicated region
    $region22: #{tpu_custom_call.1} parent=1 // pred_check
      _
    $region23: #{tpu_custom_call.1} parent=1 // pred_check_branch
      %216 = sbr.rel (0) target = $region25
    $region24: #{tpu_custom_call.1} parent=1 // pred_region
      %217 = dma.done [#allocation5], 512
    $region25: #{tpu_custom_call.1} parent=1 // pred_fallthru
      _
    %218 = vsyncpa [#allocation4], 1
    %219 = vsyncpa [#allocation7], 1
    %220 = vsyncpa [#allocation5], 1

</llo_original>
